<compile_context>
chip_gen: v7x
topology: tpu7x:2x2x1
jax: 0.10.0
libtpu: 0.0.40
codegen_flags: <defaults>
</compile_context>

<pallas_src>
import functools
import math

import jax
import jax.numpy as jnp
from jax.experimental import pallas as pl
from jax.experimental.pallas import tpu as pltpu


def _round_up(n: int, m: int) -> int:
    return (n + m - 1) // m * m


def _choose_tiles(B: int, block_rows: int):
    """Pick (TB, Bp, n_steps): even #steps when >1 (v7x megacore), small pad."""
    n = max(1, math.ceil(B / block_rows))
    if n > 1 and n % 2 == 1:
        n += 1                       # even grid -> both v7x TensorCores busy
    TB = _round_up(math.ceil(B / n), 8)
    Bp = n * TB
    return TB, Bp, n


def _outcome_kernel(x_ref, t_ref, w1x_ref, w1t_ref, b1_ref, w2_ref, b2_ref,
                    out_ref, *, d_y):
    tb = x_ref.shape[0]
    k_pad = w1t_ref.shape[0]
    out_pad = w2_ref.shape[1]

    # ---- layer 1: fused concat([x, onehot(t)]) @ W1 as two bf16 MXU matmuls.
    x = x_ref[...].astype(jnp.bfloat16)                         # (TB, d_x)
    classes = jax.lax.broadcasted_iota(jnp.int32, (tb, k_pad), 1)
    onehot = jnp.where(classes == t_ref[...], 1.0, 0.0).astype(jnp.bfloat16)

    h = jnp.dot(x, w1x_ref[...], preferred_element_type=jnp.float32)
    h = h + jnp.dot(onehot, w1t_ref[...], preferred_element_type=jnp.float32)
    h = jnp.maximum(h + b1_ref[...], 0.0)                       # f32 epilogue
    hb = h.astype(jnp.bfloat16)

    # ---- layer 2: packed [mu | log_sigma] head, single lane-dense output.
    o = jnp.dot(hb, w2_ref[...], preferred_element_type=jnp.float32)
    o = o + b2_ref[...]                                          # (TB, out_pad)

    # sigma = 0.1 + 0.9 * sigmoid(o) on sigma lanes only; exp + approx
    # reciprocal take the EUP slot (free under the matmuls / stores).
    sig = 0.1 + 0.9 * pl.reciprocal(1.0 + jnp.exp(-o), approx=True)
    lane = jax.lax.broadcasted_iota(jnp.int32, (tb, out_pad), 1)
    out_ref[...] = jnp.where(lane < d_y, o, sig).astype(out_ref.dtype)


@functools.partial(jax.jit, static_argnames=("d_y", "block_rows", "out_dtype"))
def outcome_forward(x, t, params, *, d_y, block_rows=4096,
                    out_dtype=jnp.float32):
    """Returns (mu, sigma), each (B, d_y) in out_dtype."""
    B, d_x = x.shape
    H = params["w1x"].shape[1]
    k_pad = params["w1t"].shape[0]
    out_pad = params["w2"].shape[1]

    TB, Bp, n = _choose_tiles(B, block_rows)
    if Bp != B:                                   # pad only when needed
        x = jnp.pad(x, ((0, Bp - B), (0, 0)))
        t = jnp.pad(t, ((0, Bp - B),))
    t2 = t.astype(jnp.int32).reshape(Bp, 1)

    def row_spec(shape):
        return pl.BlockSpec(shape, lambda i: (i, 0))

    def const_spec(shape):
        return pl.BlockSpec(shape, lambda i: (0, 0))   # VMEM-resident weights

    out = pl.pallas_call(
        functools.partial(_outcome_kernel, d_y=d_y),
        grid=(n,),
        in_specs=[
            row_spec((TB, d_x)),          # x
            row_spec((TB, 1)),            # t
            const_spec((d_x, H)),         # w1x
            const_spec((k_pad, H)),       # w1t
            const_spec((1, H)),           # b1
            const_spec((H, out_pad)),     # w2 (packed mu|sigma)
            const_spec((1, out_pad)),     # b2 (packed)
        ],
        out_specs=row_spec((TB, out_pad)),
        out_shape=jax.ShapeDtypeStruct((Bp, out_pad), out_dtype),
        compiler_params=pltpu.CompilerParams(
            dimension_semantics=("parallel",)),
    )(x, t2, params["w1x"], params["w1t"], params["b1"],
      params["w2"], params["b2"])

    mu = out[:B, :d_y]
    sigma = out[:B, d_y:2 * d_y]
    return mu, sigma


def init_params(key, d_x, d_y, k, hidden=128):
    """nn.Linear-style init, split / pack / pad / cast into the kernel layout."""
    d_in = d_x + k
    k_pad = _round_up(k, 8)
    out_pad = _round_up(2 * d_y, 128)
    k1, k2, k3, k4 = jax.random.split(key, 4)
    lim1 = 1.0 / float(d_in) ** 0.5
    lim2 = 1.0 / float(hidden) ** 0.5
    w1 = jax.random.uniform(k1, (d_in, hidden), jnp.float32, -lim1, lim1)
    b1 = jax.random.uniform(k2, (hidden,), jnp.float32, -lim1, lim1)
    w2 = jax.random.uniform(k3, (hidden, 2 * d_y), jnp.float32, -lim2, lim2)
    b2 = jax.random.uniform(k4, (2 * d_y,), jnp.float32, -lim2, lim2)

    w1t = jnp.zeros((k_pad, hidden), jnp.float32).at[:k].set(w1[d_x:])
    # Packed head: lanes [0:d_y] = mu, [d_y:2*d_y] = log_sigma, rest zero.
    w2p = jnp.zeros((hidden, out_pad), jnp.float32).at[:, :2 * d_y].set(w2)
    b2p = jnp.zeros((1, out_pad), jnp.float32).at[0, :2 * d_y].set(b2)

    return {
        # bf16 MXU operands (zero-padded rows/cols keep outputs exact)
        "w1x": w1[:d_x].astype(jnp.bfloat16),
        "w1t": w1t.astype(jnp.bfloat16),
        "w2": w2p.astype(jnp.bfloat16),
        # f32 epilogue terms
        "b1": b1.reshape(1, hidden),
        "b2": b2p,
    }


def _reference(x, t, params, d_y, k):
    """Pure-JAX reference emulating the kernel's bf16-operand / f32-acc math."""
    f32 = jnp.float32
    xb = x.astype(jnp.bfloat16).astype(f32)
    onehot = jax.nn.one_hot(t, k, dtype=f32)
    w1x = params["w1x"].astype(f32)
    w1t = params["w1t"][:k].astype(f32)
    h = jnp.maximum(xb @ w1x + onehot @ w1t + params["b1"], 0.0)
    hb = h.astype(jnp.bfloat16).astype(f32)
    o = hb @ params["w2"].astype(f32)[:, :2 * d_y] + params["b2"][:, :2 * d_y]
    mu = o[:, :d_y]
    sigma = 0.1 + 0.9 / (1.0 + jnp.exp(-o[:, d_y:]))
    return mu, sigma


if __name__ == "__main__":
    # Small, module-consistent demo shapes (the tiling is designed for batches
    # in the thousands; here it degenerates to a single grid step).
    B, d_x, d_y, k, hidden = 8, 4, 2, 3, 128

    key = jax.random.PRNGKey(0)
    kx, kt, kp = jax.random.split(key, 3)
    x = jax.random.normal(kx, (B, d_x), jnp.float32)
    t = jax.random.randint(kt, (B,), 0, k)
    params = init_params(kp, d_x, d_y, k, hidden)

    mu, sigma = outcome_forward(x, t, params, d_y=d_y)
    jax.block_until_ready((mu, sigma))

    mu_ref, sigma_ref = _reference(x, t, params, d_y, k)
    assert mu.shape == (B, d_y) and sigma.shape == (B, d_y)
    assert jnp.allclose(mu, mu_ref, atol=2e-3, rtol=2e-3)
    assert jnp.allclose(sigma, sigma_ref, atol=2e-3, rtol=2e-3)
    # approx-reciprocal sigmoid: allow ~2^-12 slack at the (0.1, 1.0) bounds
    assert bool(jnp.all(sigma > 0.099)) and bool(jnp.all(sigma < 1.001))

    print("KERNEL_OK")
</pallas_src>

<mosaic_0001>
module attributes {stable_mosaic.version = 11 : i64} {
  func.func @_outcome_kernel(%arg0: i32, %arg1: memref<8x4xf32, #tpu.memory_space<vmem>>, %arg2: memref<8x1xi32, #tpu.memory_space<vmem>>, %arg3: memref<4x128xbf16, #tpu.memory_space<vmem>>, %arg4: memref<8x128xbf16, #tpu.memory_space<vmem>>, %arg5: memref<1x128xf32, #tpu.memory_space<vmem>>, %arg6: memref<128x128xbf16, #tpu.memory_space<vmem>>, %arg7: memref<1x128xf32, #tpu.memory_space<vmem>>, %arg8: memref<8x128xf32, #tpu.memory_space<vmem>>) attributes {dimension_semantics = [#tpu.dimension_semantics<parallel>], iteration_bounds = array<i64: 1>, scalar_prefetch = 0 : i64, scratch_operands = 0 : i64, tpu.core_type = #tpu.core_type<tc>, window_params = [{transform_indices = @transform_0, window_bounds = array<i64: 8, 4>}, {transform_indices = @transform_1, window_bounds = array<i64: 8, 1>}, {pipeline_mode = #tpu.pipeline_mode<synchronous>, transform_indices = @transform_2, window_bounds = array<i64: 4, 128>}, {pipeline_mode = #tpu.pipeline_mode<synchronous>, transform_indices = @transform_3, window_bounds = array<i64: 8, 128>}, {pipeline_mode = #tpu.pipeline_mode<synchronous>, transform_indices = @transform_4, window_bounds = array<i64: 1, 128>}, {pipeline_mode = #tpu.pipeline_mode<synchronous>, transform_indices = @transform_5, window_bounds = array<i64: 128, 128>}, {pipeline_mode = #tpu.pipeline_mode<synchronous>, transform_indices = @transform_6, window_bounds = array<i64: 1, 128>}, {transform_indices = @transform_7, window_bounds = array<i64: 8, 128>}]} {
    %c0 = arith.constant 0 : index
    %c0_0 = arith.constant 0 : index
    %0 = vector.load %arg1[%c0, %c0_0] : memref<8x4xf32, #tpu.memory_space<vmem>>, vector<8x4xf32>
    %1 = arith.truncf %0 : vector<8x4xf32> to vector<8x4xbf16>
    %2 = tpu.iota {dimensions = array<i32: 1>} : vector<8x8xi32>
    %c0_1 = arith.constant 0 : index
    %c0_2 = arith.constant 0 : index
    %3 = vector.load %arg2[%c0_1, %c0_2] : memref<8x1xi32, #tpu.memory_space<vmem>>, vector<8x1xi32>
    %4 = vector.broadcast %3 : vector<8x1xi32> to vector<8x8xi32>
    %5 = arith.cmpi eq, %2, %4 : vector<8x8xi32>
    %cst = arith.constant 1.000000e+00 : f32
    %cst_3 = arith.constant 0.000000e+00 : f32
    %6 = vector.broadcast %cst : f32 to vector<8x8xf32>
    %7 = vector.broadcast %cst_3 : f32 to vector<8x8xf32>
    %8 = arith.select %5, %6, %7 : vector<8x8xi1>, vector<8x8xf32>
    %9 = arith.truncf %8 : vector<8x8xf32> to vector<8x8xbf16>
    %c0_4 = arith.constant 0 : index
    %c0_5 = arith.constant 0 : index
    %10 = vector.load %arg3[%c0_4, %c0_5] : memref<4x128xbf16, #tpu.memory_space<vmem>>, vector<4x128xbf16>
    %cst_6 = arith.constant dense<0.000000e+00> : vector<8x128xf32>
    %11 = tpu.matmul %1, %10, %cst_6 {dimension_numbers = #tpu.dot_dimension_numbers<[1], [0], [0], [1], [0, 0, 1, 1], [], []>} : vector<8x4xbf16>, vector<4x128xbf16>, vector<8x128xf32> -> vector<8x128xf32>
    %c0_7 = arith.constant 0 : index
    %c0_8 = arith.constant 0 : index
    %12 = vector.load %arg4[%c0_7, %c0_8] : memref<8x128xbf16, #tpu.memory_space<vmem>>, vector<8x128xbf16>
    %cst_9 = arith.constant dense<0.000000e+00> : vector<8x128xf32>
    %13 = tpu.matmul %9, %12, %cst_9 {dimension_numbers = #tpu.dot_dimension_numbers<[1], [0], [0], [1], [0, 0, 1, 1], [], []>} : vector<8x8xbf16>, vector<8x128xbf16>, vector<8x128xf32> -> vector<8x128xf32>
    %14 = arith.addf %11, %13 : vector<8x128xf32>
    %c0_10 = arith.constant 0 : index
    %c0_11 = arith.constant 0 : index
    %15 = vector.load %arg5[%c0_10, %c0_11] : memref<1x128xf32, #tpu.memory_space<vmem>>, vector<1x128xf32>
    %16 = vector.broadcast %15 : vector<1x128xf32> to vector<8x128xf32>
    %17 = arith.addf %14, %16 : vector<8x128xf32>
    %cst_12 = arith.constant 0.000000e+00 : f32
    %18 = vector.broadcast %cst_12 : f32 to vector<8x128xf32>
    %19 = arith.maximumf %17, %18 : vector<8x128xf32>
    %20 = arith.truncf %19 : vector<8x128xf32> to vector<8x128xbf16>
    %c0_13 = arith.constant 0 : index
    %c0_14 = arith.constant 0 : index
    %21 = vector.load %arg6[%c0_13, %c0_14] : memref<128x128xbf16, #tpu.memory_space<vmem>>, vector<128x128xbf16>
    %cst_15 = arith.constant dense<0.000000e+00> : vector<8x128xf32>
    %22 = tpu.matmul %20, %21, %cst_15 {dimension_numbers = #tpu.dot_dimension_numbers<[1], [0], [0], [1], [0, 0, 1, 1], [], []>} : vector<8x128xbf16>, vector<128x128xbf16>, vector<8x128xf32> -> vector<8x128xf32>
    %c0_16 = arith.constant 0 : index
    %c0_17 = arith.constant 0 : index
    %23 = vector.load %arg7[%c0_16, %c0_17] : memref<1x128xf32, #tpu.memory_space<vmem>>, vector<1x128xf32>
    %24 = vector.broadcast %23 : vector<1x128xf32> to vector<8x128xf32>
    %25 = arith.addf %22, %24 : vector<8x128xf32>
    %cst_18 = arith.constant 0.000000e+00 : f32
    %26 = vector.broadcast %cst_18 : f32 to vector<8x128xf32>
    %27 = arith.subf %26, %25 : vector<8x128xf32>
    %28 = math.exp %27 : vector<8x128xf32>
    %cst_19 = arith.constant 1.000000e+00 : f32
    %29 = vector.broadcast %cst_19 : f32 to vector<8x128xf32>
    %30 = arith.addf %29, %28 : vector<8x128xf32>
    %31 = tpu.reciprocal %30 {approx = true} : vector<8x128xf32> -> vector<8x128xf32>
    %cst_20 = arith.constant 0.899999976 : f32
    %32 = vector.broadcast %cst_20 : f32 to vector<8x128xf32>
    %33 = arith.mulf %32, %31 : vector<8x128xf32>
    %cst_21 = arith.constant 1.000000e-01 : f32
    %34 = vector.broadcast %cst_21 : f32 to vector<8x128xf32>
    %35 = arith.addf %34, %33 : vector<8x128xf32>
    %36 = tpu.iota {dimensions = array<i32: 1>} : vector<8x128xi32>
    %c2_i32 = arith.constant 2 : i32
    %37 = vector.broadcast %c2_i32 : i32 to vector<8x128xi32>
    %38 = arith.cmpi slt, %36, %37 : vector<8x128xi32>
    %39 = arith.select %38, %25, %35 : vector<8x128xi1>, vector<8x128xf32>
    %c0_22 = arith.constant 0 : index
    %c0_23 = arith.constant 0 : index
    %40 = vector.load %arg8[%c0_22, %c0_23] : memref<8x128xf32, #tpu.memory_space<vmem>>, vector<8x128xf32>
    tpu.vector_store %arg8[%c0_22, %c0_23], %39 {strides = array<i32>} : memref<8x128xf32, #tpu.memory_space<vmem>>, vector<8x128xf32>,
    return
  }
  func.func @transform_0(%arg0: i32) -> (i32, i32) {
    %c0_i32 = arith.constant 0 : i32
    %c0_i32_0 = arith.constant 0 : i32
    return %arg0, %c0_i32 : i32, i32
  }
  func.func @transform_1(%arg0: i32) -> (i32, i32) {
    %c0_i32 = arith.constant 0 : i32
    %c0_i32_0 = arith.constant 0 : i32
    return %arg0, %c0_i32 : i32, i32
  }
  func.func @transform_2(%arg0: i32) -> (i32, i32) {
    %c0_i32 = arith.constant 0 : i32
    %c0_i32_0 = arith.constant 0 : i32
    %c0_i32_1 = arith.constant 0 : i32
    return %c0_i32, %c0_i32_0 : i32, i32
  }
  func.func @transform_3(%arg0: i32) -> (i32, i32) {
    %c0_i32 = arith.constant 0 : i32
    %c0_i32_0 = arith.constant 0 : i32
    %c0_i32_1 = arith.constant 0 : i32
    return %c0_i32, %c0_i32_0 : i32, i32
  }
  func.func @transform_4(%arg0: i32) -> (i32, i32) {
    %c0_i32 = arith.constant 0 : i32
    %c0_i32_0 = arith.constant 0 : i32
    %c0_i32_1 = arith.constant 0 : i32
    return %c0_i32, %c0_i32_0 : i32, i32
  }
  func.func @transform_5(%arg0: i32) -> (i32, i32) {
    %c0_i32 = arith.constant 0 : i32
    %c0_i32_0 = arith.constant 0 : i32
    %c0_i32_1 = arith.constant 0 : i32
    return %c0_i32, %c0_i32_0 : i32, i32
  }
  func.func @transform_6(%arg0: i32) -> (i32, i32) {
    %c0_i32 = arith.constant 0 : i32
    %c0_i32_0 = arith.constant 0 : i32
    %c0_i32_1 = arith.constant 0 : i32
    return %c0_i32, %c0_i32_0 : i32, i32
  }
  func.func @transform_7(%arg0: i32) -> (i32, i32) {
    %c0_i32 = arith.constant 0 : i32
    %c0_i32_0 = arith.constant 0 : i32
    return %arg0, %c0_i32 : i32, i32
  }
}

</mosaic_0001>

<llo_original>
// kernel: outcome_forward.1
$region0: #{outcome_forward.1}
  #allocation0 [shape = 'u32[]', space=smem, size = 0x4, offset = 0x4, fixed_abs, tag = 'smem constant byte address 0x4 - core index']
  #allocation1 [shape = 'u32[144,128]{1,0:T(1,128)}', space=vmem, size = 0x12000, scoped, tag = 'internal scratch']
  %s0 = inlined_call_operand.vmem [shape: f32[8,4], index: 0, kind: input, shape index: {}]
  %s1 = inlined_call_operand.vmem [shape: s32[8,1], index: 1, kind: input, shape index: {}]
  %s2 = inlined_call_operand.vmem [shape: bf16[4,128], index: 2, kind: input, shape index: {}]
  %s3 = inlined_call_operand.vmem [shape: bf16[8,128], index: 3, kind: input, shape index: {}]
  %s4 = inlined_call_operand.vmem [shape: f32[1,128], index: 4, kind: input, shape index: {}]
  %s5 = inlined_call_operand.hbm [shape: bf16[128,128], index: 5, kind: input, shape index: {}]
  %s6 = inlined_call_operand.vmem [shape: f32[1,128], index: 6, kind: input, shape index: {}]
  %s7 = inlined_call_operand.vmem [shape: f32[8,128], index: 7, kind: output, shape index: {}]
  %s8 = sld [smem:[#allocation0]]
  $region42: #{outcome_forward.1} parent=0
    _
  %s10 = ssub.s32 1, %s8
  %s11 = scalar_select 0, %s10, %s8
  $region1: #{outcome_forward.1} parent=0
    #allocation2 [shape = 'u8[32768]{0}', space=vmem, size = 0x8000, scoped, tag = 'input window, operand 5, single buffered']
    #allocation3 [shape = 's32[1]{0}', space=sflag, size = 0x4, scoped, tag = 'scoped memory for outcome_forward.1']
    %12 = vsyncpa [#allocation3], 0
    // Predicated region
    $region2: #{outcome_forward.1} parent=1 // pred_check
      _
    $region3: #{outcome_forward.1} parent=1 // pred_check_branch
      %14 = sbr.rel (0) target = $region5
    $region4: #{outcome_forward.1} parent=1 // pred_region
      _
    $region5: #{outcome_forward.1} parent=1 // pred_fallthru
      _
    // Predicated region
    $region6: #{outcome_forward.1} parent=1 // pred_check
      _
    $region7: #{outcome_forward.1} parent=1 // pred_check_branch
      %16 = sbr.rel (0) target = $region9
    $region8: #{outcome_forward.1} parent=1 // pred_region
      _
    $region9: #{outcome_forward.1} parent=1 // pred_fallthru
      _
    // Predicated region
    $region10: #{outcome_forward.1} parent=1 // pred_check
      _
    $region11: #{outcome_forward.1} parent=1 // pred_check_branch
      %18 = sbr.rel (0) target = $region13
    $region12: #{outcome_forward.1} parent=1 // pred_region
      _
    $region13: #{outcome_forward.1} parent=1 // pred_fallthru
      _
    // Predicated region
    $region14: #{outcome_forward.1} parent=1 // pred_check
      _
    $region15: #{outcome_forward.1} parent=1 // pred_check_branch
      %20 = sbr.rel (0) target = $region17
    $region16: #{outcome_forward.1} parent=1 // pred_region
      _
    $region17: #{outcome_forward.1} parent=1 // pred_fallthru
      _
    // Predicated region
    $region18: #{outcome_forward.1} parent=1 // pred_check
      _
    $region19: #{outcome_forward.1} parent=1 // pred_check_branch
      %22 = sbr.rel (0) target = $region21
    $region20: #{outcome_forward.1} parent=1 // pred_region
      _
    $region21: #{outcome_forward.1} parent=1 // pred_fallthru
      _
    // Predicated region
    $region22: #{outcome_forward.1} parent=1 // pred_check
      _
    $region23: #{outcome_forward.1} parent=1 // pred_check_branch
      %24 = sbr.rel (0) target = $region25
    $region24: #{outcome_forward.1} parent=1 // pred_region
      %s26 = ssub.s32 1024, 1024
      %27 = vsyncadd [#allocation3], %s26
      %s28 = sshll.u32 [#allocation2], 4
      %s29 = int_to_ptr.vmem [resolvable:$true] %s28
      %34 = dma.hbm_to_vmem [thread:$0]  %s5, 1024, %s29, [#allocation3], 64, 64, 4
    $region25: #{outcome_forward.1} parent=1 // pred_fallthru
      _
    // Predicated region
    $region26: #{outcome_forward.1} parent=1 // pred_check
      _
    $region27: #{outcome_forward.1} parent=1 // pred_check_branch
      %36 = sbr.rel (0) target = $region29
    $region28: #{outcome_forward.1} parent=1 // pred_region
      _
    $region29: #{outcome_forward.1} parent=1 // pred_fallthru
      _
    // Predicated region
    $region30: #{outcome_forward.1} parent=1 // pred_check
      _
    $region31: #{outcome_forward.1} parent=1 // pred_check_branch
      %38 = sbr.rel (0) target = $region33
    $region32: #{outcome_forward.1} parent=1 // pred_region
      %39 = dma.done [#allocation3], 1024
    $region33: #{outcome_forward.1} parent=1 // pred_fallthru
      _
    %v41 = vld [vmem:[%s0] sm:$0xff]
    %v42 = vpack.c.bf16 %v41, %v41
    %v43 = vlaneseq
    %v44 = vand.u32 %v43, 127
    %v45 = vld [vmem:[%s1] sm:$0xff]
    %46 = vset.pattern.permute.xlu0 0
    %47 = vperm.xlu0 %46, %v45
    %v48 = vpop.permute.xlu0 %47
    %vm49 = vcmp.eq.s32.totalorder %v44, %v48
    %v50 = vsel %vm49, 1.0, 0.0
    %v51 = vpack.c.bf16 %v50, %v50
    %v52 = vld [vmem:[%s2] sm:$0x3]
    %v53 = vld [vmem:[%s3] sm:$0xf]
    %vm54 = vcmask 64512
    %v56 = vsel %vm54, %v51, 0
    %vm58 = vcmask 1043456
    %v60 = vsel %vm58, %v53, 0
    %62 = vmatprep.subr.bf16.mxu0 0
    %63 = vmatpush1.bf16.msra.mxu0 %v60
    %64 = vmatprep.subr.bf16.mxu0 0
    %65 = vmatpush1.bf16.msra.mxu0 0
    %66 = vmatprep.subr.bf16.mxu0 0
    %67 = vmatpush1.bf16.msra.mxu0 0
    %68 = vmatprep.subr.bf16.mxu0 0
    %69 = vmatpush1.bf16.msra.mxu0 0
    %70 = vmatprep.subr.bf16.mxu0 0
    %71 = vmatpush1.bf16.msra.mxu0 0
    %72 = vmatprep.subr.bf16.mxu0 0
    %73 = vmatpush1.bf16.msra.mxu0 0
    %74 = vmatprep.subr.bf16.mxu0 0
    %75 = vmatpush1.bf16.msra.mxu0 0
    %76 = vmatprep.subr.bf16.mxu0 0
    %77 = vmatpush1.bf16.msra.mxu0 0
    %78 = vmatprep.subr.bf16.mxu0 0
    %79 = vmatpush1.bf16.msra.mxu0 0
    %80 = vmatprep.subr.bf16.mxu0 0
    %81 = vmatpush1.bf16.msra.mxu0 0
    %82 = vmatprep.subr.bf16.mxu0 0
    %83 = vmatpush1.bf16.msra.mxu0 0
    %84 = vmatprep.subr.bf16.mxu0 0
    %85 = vmatpush1.bf16.msra.mxu0 0
    %86 = vmatprep.subr.bf16.mxu0 0
    %87 = vmatpush1.bf16.msra.mxu0 0
    %88 = vmatprep.subr.bf16.mxu0 0
    %89 = vmatpush1.bf16.msra.mxu0 0
    %90 = vmatprep.subr.bf16.mxu0 0
    %91 = vmatpush1.bf16.msra.mxu0 0
    %92 = vmatprep.subr.bf16.mxu0 0
    %93 = vmatpush1.bf16.msra.mxu0 0
    %94 = vmatprep.mubr.bf16.mxu0 0
    %95 = vmatmul.mubr.bf16.gmra.mrb[0].mxu0 %v56
    %v96 = vpop.f32.mrb[0].mxu0
    %v97 = vadd.f32 0.0, %v96
    %v98 = vpop.f32.mrb[0].mxu0
    %v99 = vpop.f32.mrb[0].mxu0
    %v100 = vpop.f32.mrb[0].mxu0
    %101 = vdwg.mxu0
    %vm102 = vcmask 31744
    %v104 = vsel %vm102, %v42, 0
    %vm106 = vcmask 1041408
    %v108 = vsel %vm106, %v52, 0
    %110 = vmatprep.subr.bf16.mxu0 0
    %111 = vmatpush1.bf16.msra.mxu0 %v108
    %112 = vmatprep.subr.bf16.mxu0 0
    %113 = vmatpush1.bf16.msra.mxu0 0
    %114 = vmatprep.subr.bf16.mxu0 0
    %115 = vmatpush1.bf16.msra.mxu0 0
    %116 = vmatprep.subr.bf16.mxu0 0
    %117 = vmatpush1.bf16.msra.mxu0 0
    %118 = vmatprep.subr.bf16.mxu0 0
    %119 = vmatpush1.bf16.msra.mxu0 0
    %120 = vmatprep.subr.bf16.mxu0 0
    %121 = vmatpush1.bf16.msra.mxu0 0
    %122 = vmatprep.subr.bf16.mxu0 0
    %123 = vmatpush1.bf16.msra.mxu0 0
    %124 = vmatprep.subr.bf16.mxu0 0
    %125 = vmatpush1.bf16.msra.mxu0 0
    %126 = vmatprep.subr.bf16.mxu0 0
    %127 = vmatpush1.bf16.msra.mxu0 0
    %128 = vmatprep.subr.bf16.mxu0 0
    %129 = vmatpush1.bf16.msra.mxu0 0
    %130 = vmatprep.subr.bf16.mxu0 0
    %131 = vmatpush1.bf16.msra.mxu0 0
    %132 = vmatprep.subr.bf16.mxu0 0
    %133 = vmatpush1.bf16.msra.mxu0 0
    %134 = vmatprep.subr.bf16.mxu0 0
    %135 = vmatpush1.bf16.msra.mxu0 0
    %136 = vmatprep.subr.bf16.mxu0 0
    %137 = vmatpush1.bf16.msra.mxu0 0
    %138 = vmatprep.subr.bf16.mxu0 0
    %139 = vmatpush1.bf16.msra.mxu0 0
    %140 = vmatprep.subr.bf16.mxu0 0
    %141 = vmatpush1.bf16.msra.mxu0 0
    %142 = vmatprep.mubr.bf16.mxu0 0
    %143 = vmatmul.mubr.bf16.gmra.mrb[0].mxu0 %v104
    %v144 = vpop.f32.mrb[0].mxu0
    %v145 = vadd.f32 %v97, %v144
    %v146 = vpop.f32.mrb[0].mxu0
    %v147 = vpop.f32.mrb[0].mxu0
    %v148 = vpop.f32.mrb[0].mxu0
    %149 = vdwg.mxu0
    %v150 = vld [vmem:[%s4] sm:$0x1]
    %v152 = vlaneseq
    %v153 = vshrl.u32 %v152, 7
    %v154 = vsub.s32 0, %v153
    %v155 = vrot.slane %v150, %v154
    %v157 = vadd.f32 %v145, %v155
    %v158 = vmax.f32 %v157, 0.0
    %v159 = vpack.c.bf16 %v158, %v158
    %v160 = vld [vmem:[#allocation2] sm:$0xf]
    %v161 = vld [vmem:[#allocation2 + $0x4] sm:$0xf]
    %v162 = vld [vmem:[#allocation2 + $0x8] sm:$0xf]
    %v163 = vld [vmem:[#allocation2 + $0xc] sm:$0xf]
    %v164 = vld [vmem:[#allocation2 + $0x10] sm:$0xf]
    %v165 = vld [vmem:[#allocation2 + $0x14] sm:$0xf]
    %v166 = vld [vmem:[#allocation2 + $0x18] sm:$0xf]
    %v167 = vld [vmem:[#allocation2 + $0x1c] sm:$0xf]
    %v168 = vld [vmem:[#allocation2 + $0x20] sm:$0xf]
    %v169 = vld [vmem:[#allocation2 + $0x24] sm:$0xf]
    %v170 = vld [vmem:[#allocation2 + $0x28] sm:$0xf]
    %v171 = vld [vmem:[#allocation2 + $0x2c] sm:$0xf]
    %v172 = vld [vmem:[#allocation2 + $0x30] sm:$0xf]
    %v173 = vld [vmem:[#allocation2 + $0x34] sm:$0xf]
    %v174 = vld [vmem:[#allocation2 + $0x38] sm:$0xf]
    %v175 = vld [vmem:[#allocation2 + $0x3c] sm:$0xf]
    %v176 = vld [vmem:[%s6] sm:$0x1]
    %v178 = vlaneseq
    %v179 = vshrl.u32 %v178, 7
    %v180 = vsub.s32 0, %v179
    %v181 = vrot.slane %v176, %v180
    %v199 = vunpack.c.l.b16 %v160
    %v200 = vunpack.c.l.b16 %v161
    %v201 = vunpack.c.l.b16 %v162
    %v202 = vunpack.c.l.b16 %v163
    %v203 = vunpack.c.l.b16 %v164
    %v204 = vunpack.c.l.b16 %v165
    %v205 = vunpack.c.l.b16 %v166
    %v206 = vunpack.c.l.b16 %v167
    %v207 = vunpack.c.l.b16 %v168
    %v208 = vunpack.c.l.b16 %v169
    %v209 = vunpack.c.l.b16 %v170
    %v210 = vunpack.c.l.b16 %v171
    %v211 = vunpack.c.l.b16 %v172
    %v212 = vunpack.c.l.b16 %v173
    %v213 = vunpack.c.l.b16 %v174
    %v214 = vunpack.c.l.b16 %v175
    %v215 = vpack.c.b16 %v200, %v199
    %v216 = vpack.c.b16 %v202, %v201
    %v217 = vpack.c.b16 %v204, %v203
    %v218 = vpack.c.b16 %v206, %v205
    %v219 = vpack.c.b16 %v208, %v207
    %v220 = vpack.c.b16 %v210, %v209
    %v221 = vpack.c.b16 %v212, %v211
    %v222 = vpack.c.b16 %v214, %v213
    %231 = vmatprep.subr.bf16.mxu0 0
    %232 = vmatpush1.bf16.msra.mxu0 %v215
    %233 = vmatprep.subr.bf16.mxu0 0
    %234 = vmatpush1.bf16.msra.mxu0 %v216
    %235 = vmatprep.subr.bf16.mxu0 0
    %236 = vmatpush1.bf16.msra.mxu0 %v217
    %237 = vmatprep.subr.bf16.mxu0 0
    %238 = vmatpush1.bf16.msra.mxu0 %v218
    %239 = vmatprep.subr.bf16.mxu0 0
    %240 = vmatpush1.bf16.msra.mxu0 %v219
    %241 = vmatprep.subr.bf16.mxu0 0
    %242 = vmatpush1.bf16.msra.mxu0 %v220
    %243 = vmatprep.subr.bf16.mxu0 0
    %244 = vmatpush1.bf16.msra.mxu0 %v221
    %245 = vmatprep.subr.bf16.mxu0 0
    %246 = vmatpush1.bf16.msra.mxu0 %v222
    %247 = vmatprep.subr.bf16.mxu0 0
    %248 = vmatpush1.bf16.msra.mxu0 0
    %249 = vmatprep.subr.bf16.mxu0 0
    %250 = vmatpush1.bf16.msra.mxu0 0
    %251 = vmatprep.subr.bf16.mxu0 0
    %252 = vmatpush1.bf16.msra.mxu0 0
    %253 = vmatprep.subr.bf16.mxu0 0
    %254 = vmatpush1.bf16.msra.mxu0 0
    %255 = vmatprep.subr.bf16.mxu0 0
    %256 = vmatpush1.bf16.msra.mxu0 0
    %257 = vmatprep.subr.bf16.mxu0 0
    %258 = vmatpush1.bf16.msra.mxu0 0
    %259 = vmatprep.subr.bf16.mxu0 0
    %260 = vmatpush1.bf16.msra.mxu0 0
    %261 = vmatprep.subr.bf16.mxu0 0
    %262 = vmatpush1.bf16.msra.mxu0 0
    %263 = vmatprep.mubr.bf16.mxu0 0
    %264 = vmatmul.mubr.bf16.gmra.mrb[0].mxu0 %v159
    %v265 = vpop.f32.mrb[0].mxu0
    %v266 = vadd.f32 %v181, %v265
    %v267 = vpop.f32.mrb[0].mxu0
    %v268 = vpop.f32.mrb[0].mxu0
    %v269 = vpop.f32.mrb[0].mxu0
    %270 = vdwg.mxu0
    %v271 = vsub.f32 0.0, %v266
    %v272 = vmul.f32 %v271, 1.442695
    %v273 = vpow.pop %v272
    %v274 = vadd.f32 %v273, 1.0
    %v275 = vrcp.pop %v274
    %v276 = vmul.f32 %v275, 0.9
    %v277 = vadd.f32 %v276, 0.1
    %vm278 = vcmp.lt.s32.totalorder %v44, 2
    %v279 = vsel %vm278, %v266, %v277
    %280 = vst [vmem:[%s7] sm:$0xff] %v279
    // Predicated region
    $region34: #{outcome_forward.1} parent=1 // pred_check
      _
    $region35: #{outcome_forward.1} parent=1 // pred_check_branch
      %282 = sbr.rel (0) target = $region37
    $region36: #{outcome_forward.1} parent=1 // pred_region
      _
    $region37: #{outcome_forward.1} parent=1 // pred_fallthru
      _
    // Predicated region
    $region38: #{outcome_forward.1} parent=1 // pred_check
      _
    $region39: #{outcome_forward.1} parent=1 // pred_check_branch
      %284 = sbr.rel (0) target = $region41
    $region40: #{outcome_forward.1} parent=1 // pred_region
      _
    $region41: #{outcome_forward.1} parent=1 // pred_fallthru
      _
    %285 = vsyncpa [#allocation3], 1

</llo_original>
